<compile_context>
chip_gen: v7x
topology: tpu7x:2x2x1
jax: 0.10.0
libtpu: 0.0.40
codegen_flags: <defaults>
</compile_context>

<pallas_src>
import functools

import jax
import jax.numpy as jnp
from jax.experimental import pallas as pl
from jax.experimental.pallas import tpu as pltpu


def _round_up(a: int, m: int) -> int:
    return (a + m - 1) // m * m


# ----------------------------------------------------------------------------
# Kernel
# ----------------------------------------------------------------------------
def gmm_head_kernel(mean_width,            # static: lanes [0, mean_width) hold mean
                    x_ref,
                    w1_ref, b1_ref,
                    w2_ref, b2_ref,
                    w3_ref, b3_ref,
                    wh_ref, bh_ref,        # fused packed [mean|logits] head
                    head_ref):
    # share MLP: Linear -> ReLU -> Linear -> ReLU -> Linear
    # Matmul inputs stay in the weights' dtype (bf16 or f32); accumulation,
    # bias add and elementwise math are f32 (v5e has no bf16 VPU/EUP).
    h = jnp.dot(x_ref[...], w1_ref[...],
                preferred_element_type=jnp.float32) + b1_ref[...]
    h = jnp.maximum(h, 0.0).astype(w2_ref.dtype)
    h = jnp.dot(h, w2_ref[...],
                preferred_element_type=jnp.float32) + b2_ref[...]
    h = jnp.maximum(h, 0.0).astype(w3_ref.dtype)
    h = (jnp.dot(h, w3_ref[...],
                 preferred_element_type=jnp.float32) + b3_ref[...]
         ).astype(wh_ref.dtype)

    # Fused packed mean|logits head: one MXU pass, one lane-dense store.
    head = jnp.dot(h, wh_ref[...],
                   preferred_element_type=jnp.float32) + bh_ref[...]
    # tanh only on the mean lanes (first `mean_width` columns); logits stay raw.
    # mean_width (=K*D) is not 128-aligned in the packed layout, so a select is
    # the cheapest correct epilogue; it runs over a single 128-lane block.
    col = jax.lax.broadcasted_iota(jnp.int32, head.shape, dimension=1)
    head_ref[...] = jnp.where(col < mean_width, jnp.tanh(head), head
                              ).astype(head_ref.dtype)


# ----------------------------------------------------------------------------
# One-time parameter preparation (head fusion, lane packing, dtype cast)
# ----------------------------------------------------------------------------
def prepare_params(params, *, num_components, output_dim,
                   compute_dtype=jnp.bfloat16):
    K, D = num_components, output_dim
    KD = K * D
    H = params["w1"].shape[1]

    if KD + K <= 128:
        # Pack mean and logits into ONE 128-lane block: mean -> [0, KD),
        # logits -> [KD, KD+K).  Halves the head matmul / weight / store width
        # versus padding each to its own 128-lane block.
        P = 128
        log_off = KD
    else:
        PM = _round_up(KD, 128)
        P = PM + _round_up(K, 128)
        log_off = PM

    w_head = jnp.zeros((H, P), jnp.float32)
    w_head = w_head.at[:, :KD].set(params["wm"])
    w_head = w_head.at[:, log_off:log_off + K].set(params["wl"])
    b_head = jnp.zeros((1, P), jnp.float32)
    b_head = b_head.at[:, :KD].set(params["bm"].reshape(1, KD))
    b_head = b_head.at[:, log_off:log_off + K].set(params["bl"].reshape(1, K))

    return dict(
        w1=params["w1"].astype(compute_dtype), b1=params["b1"].astype(jnp.float32),
        w2=params["w2"].astype(compute_dtype), b2=params["b2"].astype(jnp.float32),
        w3=params["w3"].astype(compute_dtype), b3=params["b3"].astype(jnp.float32),
        w_head=w_head.astype(compute_dtype), b_head=b_head,
        scale=params["scale"].astype(jnp.float32),
        meta=dict(K=K, D=D, KD=KD, P=P, log_off=log_off, H=H,
                  compute_dtype=compute_dtype),
    )


# ----------------------------------------------------------------------------
# Wrapper
# ----------------------------------------------------------------------------
def gmm_head_forward(x, prep, *, min_std=0.01, block_b=512,
                     min_grid_tiles=1, head_out_dtype=jnp.float32):
    """Returns (mean, scales, logits): (B,K,D), (1,K,D) broadcastable, (B,K).

    min_grid_tiles: set to 2 on v7x so the parallel batch axis can shard
    across both TensorCores; leave at 1 on v5e/v6e (single TC -> one big tile
    minimizes per-step overhead).
    """
    meta = prep["meta"]
    K, D, KD = meta["K"], meta["D"], meta["KD"]
    log_off, P, H = meta["log_off"], meta["P"], meta["H"]
    cdt = meta["compute_dtype"]
    B, input_dim = x.shape

    # Batch tile: multiple of 8 sublanes, capped at the 8-padded batch size.
    b8 = _round_up(B, 8)
    block_b = max(8, min(_round_up(block_b, 8), b8))
    if min_grid_tiles > 1 and b8 > 8:
        # Guarantee >= min_grid_tiles tiles so megacore can shard (v7x).
        block_b = min(block_b, max(8, _round_up(pl.cdiv(b8, min_grid_tiles), 8)))
    B_pad = _round_up(B, block_b)

    xk = x.astype(cdt)
    if B_pad != B:
        xk = jnp.pad(xk, ((0, B_pad - B), (0, 0)))
    grid = (B_pad // block_b,)

    # Replicated (grid-invariant) operands.  NOTE: pipeline_mode=pl.Buffered(1)
    # would single-buffer these; unnecessary at H=32 (~15 KiB of weights).
    def rep(shape):
        return pl.BlockSpec(shape, lambda i: (0, 0))

    in_specs = [
        pl.BlockSpec((block_b, input_dim), lambda i: (i, 0)),   # x tile
        rep((input_dim, H)), rep((1, H)),                       # w1, b1
        rep((H, H)), rep((1, H)),                               # w2, b2
        rep((H, H)), rep((1, H)),                               # w3, b3
        rep((H, P)), rep((1, P)),                               # fused head
    ]
    out_specs = pl.BlockSpec((block_b, P), lambda i: (i, 0))
    out_shape = jax.ShapeDtypeStruct((B_pad, P), head_out_dtype)

    # Explicit VMEM budget with generation-aware ceiling (v7x has only 64 MiB
    # physical per TC; leave ~25% headroom for compiler scratch / pipeline).
    itemsize = jnp.dtype(cdt).itemsize
    out_itemsize = jnp.dtype(head_out_dtype).itemsize
    weight_bytes = ((input_dim * H + 2 * H * H + H * P) * itemsize
                    + (3 * H + P) * 4)
    block_bytes = (block_b * input_dim * itemsize
                   + block_b * P * out_itemsize)
    try:
        vmem_cap = pltpu.get_tpu_info().vmem_capacity_bytes
    except Exception:  # pragma: no cover - conservative fallback
        vmem_cap = 64 << 20
    vmem_ceiling = (vmem_cap * 3) // 4
    vmem_limit = int(min(vmem_ceiling,
                         max(16 << 20,
                             2 * (block_bytes + weight_bytes) + (2 << 20))))

    cost = pl.CostEstimate(
        flops=2 * B_pad * (input_dim * H + 2 * H * H + H * P),
        transcendentals=B_pad * P,   # tanh evaluated on all P lanes pre-select
        bytes_accessed=(B_pad * input_dim * itemsize + weight_bytes
                        + B_pad * P * out_itemsize),
    )

    kernel = functools.partial(gmm_head_kernel, KD)

    head = pl.pallas_call(
        kernel,
        out_shape=out_shape,
        grid_spec=pltpu.PrefetchScalarGridSpec(
            num_scalar_prefetch=0,
            grid=grid,
            in_specs=in_specs,
            out_specs=out_specs,
        ),
        compiler_params=pltpu.CompilerParams(
            dimension_semantics=("parallel",),   # batch tiles -> megacore on v7x
            vmem_limit_bytes=vmem_limit,
        ),
        cost_estimate=cost,
    )(
        xk,
        prep["w1"], prep["b1"],
        prep["w2"], prep["b2"],
        prep["w3"], prep["b3"],
        prep["w_head"], prep["b_head"],
    )

    head = head[:B]                                   # drop batch padding
    mean = head[:, :KD].astype(jnp.float32).reshape(B, K, D)
    logits = head[:, log_off:log_off + K].astype(jnp.float32)
    # Batch-independent fixed scale: computed once outside the kernel and kept
    # at (1, K, D) -- broadcast lazily at the consumer, never materialized.
    scales = jax.nn.softplus(prep["scale"]).reshape(1, K, D) + min_std
    return mean, scales, logits


# ----------------------------------------------------------------------------
# Parameter init + plain-JAX reference (module semantics, f32)
# ----------------------------------------------------------------------------
def init_params(key, input_dim, hidden, output_dim, num_components):
    K, D = num_components, output_dim
    keys = jax.random.split(key, 6)

    def lin(k, fan_in, fan_out):
        w = 0.02 * jax.random.normal(k, (fan_in, fan_out), jnp.float32)
        b = jnp.zeros((1, fan_out), jnp.float32)
        return w, b

    w1, b1 = lin(keys[0], input_dim, hidden)
    w2, b2 = lin(keys[1], hidden, hidden)
    w3, b3 = lin(keys[2], hidden, hidden)
    wm, bm = lin(keys[3], hidden, K * D)
    wl, bl = lin(keys[4], hidden, K)
    scale = jnp.zeros((1, K * D), jnp.float32)   # nn.Parameter(zeros(1,K,D)) flattened
    return dict(w1=w1, b1=b1, w2=w2, b2=b2, w3=w3, b3=b3,
                wm=wm, bm=bm, wl=wl, bl=bl, scale=scale)


def reference_forward(x, params, *, num_components, output_dim, min_std=0.01):
    B = x.shape[0]
    K, D = num_components, output_dim
    h = jnp.maximum(x @ params["w1"] + params["b1"], 0.0)
    h = jnp.maximum(h @ params["w2"] + params["b2"], 0.0)
    h = h @ params["w3"] + params["b3"]
    mean = jnp.tanh((h @ params["wm"] + params["bm"]).reshape(B, K, D))
    logits = h @ params["wl"] + params["bl"]
    scales = jax.nn.softplus(params["scale"]).reshape(1, K, D) + min_std
    return mean, scales, logits


if __name__ == "__main__":
    B, input_dim, hidden, output_dim, num_components = 8, 32, 32, 8, 3
    min_std = 0.01

    key = jax.random.PRNGKey(0)
    kx, kp, kx2 = jax.random.split(key, 3)
    x = jax.random.normal(kx, (B, input_dim), jnp.float32)
    params = init_params(kp, input_dim, hidden, output_dim, num_components)

    mean_r, scales_r, logits_r = reference_forward(
        x, params, num_components=num_components, output_dim=output_dim,
        min_std=min_std)

    # ---- f32 compute path: matches module semantics tightly ----
    prep_f32 = prepare_params(params, num_components=num_components,
                              output_dim=output_dim, compute_dtype=jnp.float32)
    mean, scales, logits = gmm_head_forward(x, prep_f32, min_std=min_std)
    jax.block_until_ready((mean, scales, logits))
    assert mean.shape == (B, num_components, output_dim)
    assert scales.shape == (1, num_components, output_dim)
    assert logits.shape == (B, num_components)
    assert jnp.allclose(mean, mean_r, atol=1e-5)
    assert jnp.allclose(jnp.broadcast_to(scales, scales_r.shape + ()), scales_r,
                        atol=1e-5)
    assert jnp.allclose(logits, logits_r, atol=1e-5)

    # ---- bf16 weights/activations (f32 accumulate, f32 output) ----
    prep_bf16 = prepare_params(params, num_components=num_components,
                               output_dim=output_dim, compute_dtype=jnp.bfloat16)
    mean_b, scales_b, logits_b = gmm_head_forward(x, prep_bf16, min_std=min_std)
    jax.block_until_ready((mean_b, scales_b, logits_b))
    assert jnp.allclose(mean_b, mean_r, atol=2e-3)
    assert jnp.allclose(scales_b, scales_r[:1], atol=1e-5)
    assert jnp.allclose(logits_b, logits_r, atol=2e-3)

    # ---- bf16 output store (halves the dominant HBM writeback, v6e/v7x) ----
    mean_bo, _, logits_bo = gmm_head_forward(
        x, prep_bf16, min_std=min_std, head_out_dtype=jnp.bfloat16)
    jax.block_until_ready((mean_bo, logits_bo))
    assert jnp.allclose(mean_bo, mean_r, atol=5e-3)
    assert jnp.allclose(logits_bo, logits_r, atol=5e-3)

    # ---- multi-tile grid + batch padding path (B not a multiple of block_b),
    #      with the v7x-style >=2-tile guarantee exercised ----
    B2 = 20
    x2 = jax.random.normal(kx2, (B2, input_dim), jnp.float32)
    mean2, scales2, logits2 = gmm_head_forward(
        x2, prep_f32, min_std=min_std, block_b=8, min_grid_tiles=2)
    jax.block_until_ready((mean2, scales2, logits2))
    mean2_r, scales2_r, logits2_r = reference_forward(
        x2, params, num_components=num_components, output_dim=output_dim,
        min_std=min_std)
    assert jnp.allclose(mean2, mean2_r, atol=1e-5)
    assert jnp.allclose(scales2, scales2_r, atol=1e-5)
    assert jnp.allclose(logits2, logits2_r, atol=1e-5)

    print("KERNEL_OK")
</pallas_src>

<mosaic_0001>
module attributes {stable_mosaic.version = 11 : i64} {
  func.func @gmm_head_kernel(%arg0: i32, %arg1: memref<8x32xf32, #tpu.memory_space<vmem>>, %arg2: memref<32x32xf32, #tpu.memory_space<vmem>>, %arg3: memref<1x32xf32, #tpu.memory_space<vmem>>, %arg4: memref<32x32xf32, #tpu.memory_space<vmem>>, %arg5: memref<1x32xf32, #tpu.memory_space<vmem>>, %arg6: memref<32x32xf32, #tpu.memory_space<vmem>>, %arg7: memref<1x32xf32, #tpu.memory_space<vmem>>, %arg8: memref<32x128xf32, #tpu.memory_space<vmem>>, %arg9: memref<1x128xf32, #tpu.memory_space<vmem>>, %arg10: memref<8x128xf32, #tpu.memory_space<vmem>>) attributes {dimension_semantics = [#tpu.dimension_semantics<parallel>], iteration_bounds = array<i64: 1>, scalar_prefetch = 0 : i64, scratch_operands = 0 : i64, tpu.core_type = #tpu.core_type<tc>, window_params = [{transform_indices = @transform_0, window_bounds = array<i64: 8, 32>}, {pipeline_mode = #tpu.pipeline_mode<synchronous>, transform_indices = @transform_1, window_bounds = array<i64: 32, 32>}, {pipeline_mode = #tpu.pipeline_mode<synchronous>, transform_indices = @transform_2, window_bounds = array<i64: 1, 32>}, {pipeline_mode = #tpu.pipeline_mode<synchronous>, transform_indices = @transform_3, window_bounds = array<i64: 32, 32>}, {pipeline_mode = #tpu.pipeline_mode<synchronous>, transform_indices = @transform_4, window_bounds = array<i64: 1, 32>}, {pipeline_mode = #tpu.pipeline_mode<synchronous>, transform_indices = @transform_5, window_bounds = array<i64: 32, 32>}, {pipeline_mode = #tpu.pipeline_mode<synchronous>, transform_indices = @transform_6, window_bounds = array<i64: 1, 32>}, {pipeline_mode = #tpu.pipeline_mode<synchronous>, transform_indices = @transform_7, window_bounds = array<i64: 32, 128>}, {pipeline_mode = #tpu.pipeline_mode<synchronous>, transform_indices = @transform_8, window_bounds = array<i64: 1, 128>}, {transform_indices = @transform_9, window_bounds = array<i64: 8, 128>}]} {
    %c0 = arith.constant 0 : index
    %c0_0 = arith.constant 0 : index
    %0 = vector.load %arg1[%c0, %c0_0] : memref<8x32xf32, #tpu.memory_space<vmem>>, vector<8x32xf32>
    %c0_1 = arith.constant 0 : index
    %c0_2 = arith.constant 0 : index
    %1 = vector.load %arg2[%c0_1, %c0_2] : memref<32x32xf32, #tpu.memory_space<vmem>>, vector<32x32xf32>
    %cst = arith.constant dense<0.000000e+00> : vector<8x32xf32>
    %2 = tpu.matmul %0, %1, %cst {dimension_numbers = #tpu.dot_dimension_numbers<[1], [0], [0], [1], [0, 0, 1, 1], [], []>} : vector<8x32xf32>, vector<32x32xf32>, vector<8x32xf32> -> vector<8x32xf32>
    %c0_3 = arith.constant 0 : index
    %c0_4 = arith.constant 0 : index
    %3 = vector.load %arg3[%c0_3, %c0_4] : memref<1x32xf32, #tpu.memory_space<vmem>>, vector<1x32xf32>
    %4 = vector.broadcast %3 : vector<1x32xf32> to vector<8x32xf32>
    %5 = arith.addf %2, %4 : vector<8x32xf32>
    %cst_5 = arith.constant 0.000000e+00 : f32
    %6 = vector.broadcast %cst_5 : f32 to vector<8x32xf32>
    %7 = arith.maximumf %5, %6 : vector<8x32xf32>
    %c0_6 = arith.constant 0 : index
    %c0_7 = arith.constant 0 : index
    %8 = vector.load %arg4[%c0_6, %c0_7] : memref<32x32xf32, #tpu.memory_space<vmem>>, vector<32x32xf32>
    %cst_8 = arith.constant dense<0.000000e+00> : vector<8x32xf32>
    %9 = tpu.matmul %7, %8, %cst_8 {dimension_numbers = #tpu.dot_dimension_numbers<[1], [0], [0], [1], [0, 0, 1, 1], [], []>} : vector<8x32xf32>, vector<32x32xf32>, vector<8x32xf32> -> vector<8x32xf32>
    %c0_9 = arith.constant 0 : index
    %c0_10 = arith.constant 0 : index
    %10 = vector.load %arg5[%c0_9, %c0_10] : memref<1x32xf32, #tpu.memory_space<vmem>>, vector<1x32xf32>
    %11 = vector.broadcast %10 : vector<1x32xf32> to vector<8x32xf32>
    %12 = arith.addf %9, %11 : vector<8x32xf32>
    %cst_11 = arith.constant 0.000000e+00 : f32
    %13 = vector.broadcast %cst_11 : f32 to vector<8x32xf32>
    %14 = arith.maximumf %12, %13 : vector<8x32xf32>
    %c0_12 = arith.constant 0 : index
    %c0_13 = arith.constant 0 : index
    %15 = vector.load %arg6[%c0_12, %c0_13] : memref<32x32xf32, #tpu.memory_space<vmem>>, vector<32x32xf32>
    %cst_14 = arith.constant dense<0.000000e+00> : vector<8x32xf32>
    %16 = tpu.matmul %14, %15, %cst_14 {dimension_numbers = #tpu.dot_dimension_numbers<[1], [0], [0], [1], [0, 0, 1, 1], [], []>} : vector<8x32xf32>, vector<32x32xf32>, vector<8x32xf32> -> vector<8x32xf32>
    %c0_15 = arith.constant 0 : index
    %c0_16 = arith.constant 0 : index
    %17 = vector.load %arg7[%c0_15, %c0_16] : memref<1x32xf32, #tpu.memory_space<vmem>>, vector<1x32xf32>
    %18 = vector.broadcast %17 : vector<1x32xf32> to vector<8x32xf32>
    %19 = arith.addf %16, %18 : vector<8x32xf32>
    %c0_17 = arith.constant 0 : index
    %c0_18 = arith.constant 0 : index
    %20 = vector.load %arg8[%c0_17, %c0_18] : memref<32x128xf32, #tpu.memory_space<vmem>>, vector<32x128xf32>
    %cst_19 = arith.constant dense<0.000000e+00> : vector<8x128xf32>
    %21 = tpu.matmul %19, %20, %cst_19 {dimension_numbers = #tpu.dot_dimension_numbers<[1], [0], [0], [1], [0, 0, 1, 1], [], []>} : vector<8x32xf32>, vector<32x128xf32>, vector<8x128xf32> -> vector<8x128xf32>
    %c0_20 = arith.constant 0 : index
    %c0_21 = arith.constant 0 : index
    %22 = vector.load %arg9[%c0_20, %c0_21] : memref<1x128xf32, #tpu.memory_space<vmem>>, vector<1x128xf32>
    %23 = vector.broadcast %22 : vector<1x128xf32> to vector<8x128xf32>
    %24 = arith.addf %21, %23 : vector<8x128xf32>
    %25 = tpu.iota {dimensions = array<i32: 1>} : vector<8x128xi32>
    %c24_i32 = arith.constant 24 : i32
    %26 = vector.broadcast %c24_i32 : i32 to vector<8x128xi32>
    %27 = arith.cmpi slt, %25, %26 : vector<8x128xi32>
    %28 = math.tanh %24 : vector<8x128xf32>
    %29 = arith.select %27, %28, %24 : vector<8x128xi1>, vector<8x128xf32>
    %c0_22 = arith.constant 0 : index
    %c0_23 = arith.constant 0 : index
    %30 = vector.load %arg10[%c0_22, %c0_23] : memref<8x128xf32, #tpu.memory_space<vmem>>, vector<8x128xf32>
    tpu.vector_store %arg10[%c0_22, %c0_23], %29 {strides = array<i32>} : memref<8x128xf32, #tpu.memory_space<vmem>>, vector<8x128xf32>,
    return
  }
  func.func @transform_0(%arg0: i32) -> (i32, i32) {
    %c0_i32 = arith.constant 0 : i32
    %c0_i32_0 = arith.constant 0 : i32
    return %arg0, %c0_i32 : i32, i32
  }
  func.func @transform_1(%arg0: i32) -> (i32, i32) {
    %c0_i32 = arith.constant 0 : i32
    %c0_i32_0 = arith.constant 0 : i32
    %c0_i32_1 = arith.constant 0 : i32
    return %c0_i32, %c0_i32_0 : i32, i32
  }
  func.func @transform_2(%arg0: i32) -> (i32, i32) {
    %c0_i32 = arith.constant 0 : i32
    %c0_i32_0 = arith.constant 0 : i32
    %c0_i32_1 = arith.constant 0 : i32
    return %c0_i32, %c0_i32_0 : i32, i32
  }
  func.func @transform_3(%arg0: i32) -> (i32, i32) {
    %c0_i32 = arith.constant 0 : i32
    %c0_i32_0 = arith.constant 0 : i32
    %c0_i32_1 = arith.constant 0 : i32
    return %c0_i32, %c0_i32_0 : i32, i32
  }
  func.func @transform_4(%arg0: i32) -> (i32, i32) {
    %c0_i32 = arith.constant 0 : i32
    %c0_i32_0 = arith.constant 0 : i32
    %c0_i32_1 = arith.constant 0 : i32
    return %c0_i32, %c0_i32_0 : i32, i32
  }
  func.func @transform_5(%arg0: i32) -> (i32, i32) {
    %c0_i32 = arith.constant 0 : i32
    %c0_i32_0 = arith.constant 0 : i32
    %c0_i32_1 = arith.constant 0 : i32
    return %c0_i32, %c0_i32_0 : i32, i32
  }
  func.func @transform_6(%arg0: i32) -> (i32, i32) {
    %c0_i32 = arith.constant 0 : i32
    %c0_i32_0 = arith.constant 0 : i32
    %c0_i32_1 = arith.constant 0 : i32
    return %c0_i32, %c0_i32_0 : i32, i32
  }
  func.func @transform_7(%arg0: i32) -> (i32, i32) {
    %c0_i32 = arith.constant 0 : i32
    %c0_i32_0 = arith.constant 0 : i32
    %c0_i32_1 = arith.constant 0 : i32
    return %c0_i32, %c0_i32_0 : i32, i32
  }
  func.func @transform_8(%arg0: i32) -> (i32, i32) {
    %c0_i32 = arith.constant 0 : i32
    %c0_i32_0 = arith.constant 0 : i32
    %c0_i32_1 = arith.constant 0 : i32
    return %c0_i32, %c0_i32_0 : i32, i32
  }
  func.func @transform_9(%arg0: i32) -> (i32, i32) {
    %c0_i32 = arith.constant 0 : i32
    %c0_i32_0 = arith.constant 0 : i32
    return %arg0, %c0_i32 : i32, i32
  }
}

</mosaic_0001>

<llo_original>
// kernel: tpu_custom_call.1
$region0: #{tpu_custom_call.1}
  #allocation0 [shape = 'u32[]', space=smem, size = 0x4, offset = 0x4, fixed_abs, tag = 'smem constant byte address 0x4 - core index']
  #allocation1 [shape = 'u32[144,128]{1,0:T(1,128)}', space=vmem, size = 0x12000, scoped, tag = 'internal scratch']
  %s0 = inlined_call_operand.hbm [shape: f32[8,32], index: 0, kind: input, shape index: {}]
  %s1 = inlined_call_operand.hbm [shape: f32[32,32], index: 1, kind: input, shape index: {}]
  %s2 = inlined_call_operand.vmem [shape: f32[1,32], index: 2, kind: input, shape index: {}]
  %s3 = inlined_call_operand.hbm [shape: f32[32,32], index: 3, kind: input, shape index: {}]
  %s4 = inlined_call_operand.vmem [shape: f32[1,32], index: 4, kind: input, shape index: {}]
  %s5 = inlined_call_operand.hbm [shape: f32[32,32], index: 5, kind: input, shape index: {}]
  %s6 = inlined_call_operand.vmem [shape: f32[1,32], index: 6, kind: input, shape index: {}]
  %s7 = inlined_call_operand.hbm [shape: f32[32,128], index: 7, kind: input, shape index: {}]
  %s8 = inlined_call_operand.vmem [shape: f32[1,128], index: 8, kind: input, shape index: {}]
  %s9 = inlined_call_operand.hbm [shape: f32[8,128], index: 9, kind: output, shape index: {}]
  %s10 = sld [smem:[#allocation0]]
  $region66: #{tpu_custom_call.1} parent=0
    _
  %s12 = ssub.s32 1, %s10
  %s13 = scalar_select 0, %s12, %s10
  $region1: #{tpu_custom_call.1} parent=0
    #allocation2 [shape = 'u8[4096]{0}', space=vmem, size = 0x1000, scoped, tag = 'input window, operand 0, single buffered']
    #allocation3 [shape = 's32[1]{0}', space=sflag, size = 0x4, scoped, tag = 'scoped memory for tpu_custom_call.1']
    #allocation4 [shape = 's32[1]{0}', space=sflag, size = 0x4, scoped, tag = 'scoped memory for tpu_custom_call.1']
    #allocation5 [shape = 'u8[16384]{0}', space=vmem, size = 0x4000, scoped, tag = 'input window, operand 1, single buffered']
    #allocation6 [shape = 's32[1]{0}', space=sflag, size = 0x4, scoped, tag = 'scoped memory for tpu_custom_call.1']
    #allocation7 [shape = 'u8[16384]{0}', space=vmem, size = 0x4000, scoped, tag = 'input window, operand 3, single buffered']
    #allocation8 [shape = 'u8[16384]{0}', space=vmem, size = 0x4000, scoped, tag = 'input window, operand 5, single buffered']
    #allocation9 [shape = 's32[1]{0}', space=sflag, size = 0x4, scoped, tag = 'scoped memory for tpu_custom_call.1']
    #allocation10 [shape = 'u8[16384]{0}', space=vmem, size = 0x4000, scoped, tag = 'input window, operand 7, single buffered']
    #allocation11 [shape = 'u8[4096]{0}', space=vmem, size = 0x1000, scoped, tag = 'output window, operand 0, single buffered']
    %14 = vsyncpa [#allocation3], 0
    %15 = vsyncpa [#allocation6], 0
    %16 = vsyncpa [#allocation9], 0
    %17 = vsyncpa [#allocation4], 0
    // Predicated region
    $region2: #{tpu_custom_call.1} parent=1 // pred_check
      _
    $region3: #{tpu_custom_call.1} parent=1 // pred_check_branch
      %19 = sbr.rel (0) target = $region5
    $region4: #{tpu_custom_call.1} parent=1 // pred_region
      %s21 = ssub.s32 128, 128
      %22 = vsyncadd [#allocation3], %s21
      %s24 = sshll.u32 [#allocation2], 4
      %s25 = int_to_ptr.vmem [resolvable:$true] %s24
      %27 = dma.hbm_to_vmem [thread:$0]  %s0, 128, %s25, [#allocation3]
    $region5: #{tpu_custom_call.1} parent=1 // pred_fallthru
      _
    // Predicated region
    $region6: #{tpu_custom_call.1} parent=1 // pred_check
      _
    $region7: #{tpu_custom_call.1} parent=1 // pred_check_branch
      %29 = sbr.rel (0) target = $region9
    $region8: #{tpu_custom_call.1} parent=1 // pred_region
      %s31 = ssub.s32 512, 512
      %32 = vsyncadd [#allocation6], %s31
      %s33 = sshll.u32 [#allocation5], 4
      %s34 = int_to_ptr.vmem [resolvable:$true] %s33
      %39 = dma.hbm_to_vmem [thread:$0]  %s1, 512, %s34, [#allocation6], 128, 128, 8
    $region9: #{tpu_custom_call.1} parent=1 // pred_fallthru
      _
    // Predicated region
    $region10: #{tpu_custom_call.1} parent=1 // pred_check
      _
    $region11: #{tpu_custom_call.1} parent=1 // pred_check_branch
      %41 = sbr.rel (0) target = $region13
    $region12: #{tpu_custom_call.1} parent=1 // pred_region
      _
    $region13: #{tpu_custom_call.1} parent=1 // pred_fallthru
      _
    // Predicated region
    $region14: #{tpu_custom_call.1} parent=1 // pred_check
      _
    $region15: #{tpu_custom_call.1} parent=1 // pred_check_branch
      %43 = sbr.rel (0) target = $region17
    $region16: #{tpu_custom_call.1} parent=1 // pred_region
      %s45 = ssub.s32 512, 512
      %46 = vsyncadd [#allocation6], %s45
      %s47 = sshll.u32 [#allocation7], 4
      %s48 = int_to_ptr.vmem [resolvable:$true] %s47
      %53 = dma.hbm_to_vmem [thread:$0]  %s3, 512, %s48, [#allocation6], 128, 128, 8
    $region17: #{tpu_custom_call.1} parent=1 // pred_fallthru
      _
    // Predicated region
    $region18: #{tpu_custom_call.1} parent=1 // pred_check
      _
    $region19: #{tpu_custom_call.1} parent=1 // pred_check_branch
      %55 = sbr.rel (0) target = $region21
    $region20: #{tpu_custom_call.1} parent=1 // pred_region
      _
    $region21: #{tpu_custom_call.1} parent=1 // pred_fallthru
      _
    // Predicated region
    $region22: #{tpu_custom_call.1} parent=1 // pred_check
      _
    $region23: #{tpu_custom_call.1} parent=1 // pred_check_branch
      %57 = sbr.rel (0) target = $region25
    $region24: #{tpu_custom_call.1} parent=1 // pred_region
      %s59 = ssub.s32 512, 512
      %60 = vsyncadd [#allocation9], %s59
      %s61 = sshll.u32 [#allocation8], 4
      %s62 = int_to_ptr.vmem [resolvable:$true] %s61
      %67 = dma.hbm_to_vmem [thread:$0]  %s5, 512, %s62, [#allocation9], 128, 128, 8
    $region25: #{tpu_custom_call.1} parent=1 // pred_fallthru
      _
    // Predicated region
    $region26: #{tpu_custom_call.1} parent=1 // pred_check
      _
    $region27: #{tpu_custom_call.1} parent=1 // pred_check_branch
      %69 = sbr.rel (0) target = $region29
    $region28: #{tpu_custom_call.1} parent=1 // pred_region
      _
    $region29: #{tpu_custom_call.1} parent=1 // pred_fallthru
      _
    // Predicated region
    $region30: #{tpu_custom_call.1} parent=1 // pred_check
      _
    $region31: #{tpu_custom_call.1} parent=1 // pred_check_branch
      %71 = sbr.rel (0) target = $region33
    $region32: #{tpu_custom_call.1} parent=1 // pred_region
      %s73 = ssub.s32 512, 512
      %74 = vsyncadd [#allocation9], %s73
      %s75 = sshll.u32 [#allocation10], 4
      %s76 = int_to_ptr.vmem [resolvable:$true] %s75
      %81 = dma.hbm_to_vmem [thread:$0]  %s7, 512, %s76, [#allocation9], 128, 128, 8
    $region33: #{tpu_custom_call.1} parent=1 // pred_fallthru
      _
    // Predicated region
    $region34: #{tpu_custom_call.1} parent=1 // pred_check
      _
    $region35: #{tpu_custom_call.1} parent=1 // pred_check_branch
      %83 = sbr.rel (0) target = $region37
    $region36: #{tpu_custom_call.1} parent=1 // pred_region
      _
    $region37: #{tpu_custom_call.1} parent=1 // pred_fallthru
      _
    // Predicated region
    $region38: #{tpu_custom_call.1} parent=1 // pred_check
      _
    $region39: #{tpu_custom_call.1} parent=1 // pred_check_branch
      %85 = sbr.rel (0) target = $region41
    $region40: #{tpu_custom_call.1} parent=1 // pred_region
      %86 = dma.done [#allocation3], 128
    $region41: #{tpu_custom_call.1} parent=1 // pred_fallthru
      _
    // Predicated region
    $region42: #{tpu_custom_call.1} parent=1 // pred_check
      _
    $region43: #{tpu_custom_call.1} parent=1 // pred_check_branch
      %88 = sbr.rel (0) target = $region45
    $region44: #{tpu_custom_call.1} parent=1 // pred_region
      %89 = dma.done [#allocation6], 512
    $region45: #{tpu_custom_call.1} parent=1 // pred_fallthru
      _
    // Predicated region
    $region46: #{tpu_custom_call.1} parent=1 // pred_check
      _
    $region47: #{tpu_custom_call.1} parent=1 // pred_check_branch
      %91 = sbr.rel (0) target = $region49
    $region48: #{tpu_custom_call.1} parent=1 // pred_region
      %92 = dma.done [#allocation6], 512
    $region49: #{tpu_custom_call.1} parent=1 // pred_fallthru
      _
    // Predicated region
    $region50: #{tpu_custom_call.1} parent=1 // pred_check
      _
    $region51: #{tpu_custom_call.1} parent=1 // pred_check_branch
      %94 = sbr.rel (0) target = $region53
    $region52: #{tpu_custom_call.1} parent=1 // pred_region
      %95 = dma.done [#allocation9], 512
    $region53: #{tpu_custom_call.1} parent=1 // pred_fallthru
      _
    // Predicated region
    $region54: #{tpu_custom_call.1} parent=1 // pred_check
      _
    $region55: #{tpu_custom_call.1} parent=1 // pred_check_branch
      %97 = sbr.rel (0) target = $region57
    $region56: #{tpu_custom_call.1} parent=1 // pred_region
      %98 = dma.done [#allocation9], 512
    $region57: #{tpu_custom_call.1} parent=1 // pred_fallthru
      _
    %v99 = vld [vmem:[#allocation2] sm:$0xff]
    %v100 = vld [vmem:[#allocation5] sm:$0xff]
    %v101 = vld [vmem:[#allocation5 + $0x8] sm:$0xff]
    %v102 = vld [vmem:[#allocation5 + $0x10] sm:$0xff]
    %v103 = vld [vmem:[#allocation5 + $0x18] sm:$0xff]
    %v104 = vld [vmem:[%s2] sm:$0x1]
    %v106 = vlaneseq
    %v107 = vshrl.u32 %v106, 7
    %v108 = vsub.s32 0, %v107
    %v109 = vrot.slane %v104, %v108
    %vm111 = vcmask 261120
    %v113 = vsel %vm111, %v99, 0
    %115 = vmatprep.subr.mxu0 0.0
    %116 = vmatpush1.msra.mxu0 %v100
    %117 = vmatprep.subr.mxu0 0.0
    %118 = vmatpush1.msra.mxu0 %v101
    %119 = vmatprep.subr.mxu0 0.0
    %120 = vmatpush1.msra.mxu0 %v102
    %121 = vmatprep.subr.mxu0 0.0
    %122 = vmatpush1.msra.mxu0 %v103
    %123 = vmatprep.subr.mxu0 0.0
    %124 = vmatpush1.msra.mxu0 0.0
    %125 = vmatprep.subr.mxu0 0.0
    %126 = vmatpush1.msra.mxu0 0.0
    %127 = vmatprep.subr.mxu0 0.0
    %128 = vmatpush1.msra.mxu0 0.0
    %129 = vmatprep.subr.mxu0 0.0
    %130 = vmatpush1.msra.mxu0 0.0
    %131 = vmatprep.subr.mxu0 0.0
    %132 = vmatpush1.msra.mxu0 0.0
    %133 = vmatprep.subr.mxu0 0.0
    %134 = vmatpush1.msra.mxu0 0.0
    %135 = vmatprep.subr.mxu0 0.0
    %136 = vmatpush1.msra.mxu0 0.0
    %137 = vmatprep.subr.mxu0 0.0
    %138 = vmatpush1.msra.mxu0 0.0
    %139 = vmatprep.subr.mxu0 0.0
    %140 = vmatpush1.msra.mxu0 0.0
    %141 = vmatprep.subr.mxu0 0.0
    %142 = vmatpush1.msra.mxu0 0.0
    %143 = vmatprep.subr.mxu0 0.0
    %144 = vmatpush1.msra.mxu0 0.0
    %145 = vmatprep.subr.mxu0 0.0
    %146 = vmatpush1.msra.mxu0 0.0
    %147 = vmatprep.subr.mxu0 0.0
    %148 = vmatpush1.msra.mxu0 0.0
    %149 = vmatprep.subr.mxu0 0.0
    %150 = vmatpush1.msra.mxu0 0.0
    %151 = vmatprep.subr.mxu0 0.0
    %152 = vmatpush1.msra.mxu0 0.0
    %153 = vmatprep.subr.mxu0 0.0
    %154 = vmatpush1.msra.mxu0 0.0
    %155 = vmatprep.subr.mxu0 0.0
    %156 = vmatpush1.msra.mxu0 0.0
    %157 = vmatprep.subr.mxu0 0.0
    %158 = vmatpush1.msra.mxu0 0.0
    %159 = vmatprep.subr.mxu0 0.0
    %160 = vmatpush1.msra.mxu0 0.0
    %161 = vmatprep.subr.mxu0 0.0
    %162 = vmatpush1.msra.mxu0 0.0
    %163 = vmatprep.subr.mxu0 0.0
    %164 = vmatpush1.msra.mxu0 0.0
    %165 = vmatprep.subr.mxu0 0.0
    %166 = vmatpush1.msra.mxu0 0.0
    %167 = vmatprep.subr.mxu0 0.0
    %168 = vmatpush1.msra.mxu0 0.0
    %169 = vmatprep.subr.mxu0 0.0
    %170 = vmatpush1.msra.mxu0 0.0
    %171 = vmatprep.subr.mxu0 0.0
    %172 = vmatpush1.msra.mxu0 0.0
    %173 = vmatprep.subr.mxu0 0.0
    %174 = vmatpush1.msra.mxu0 0.0
    %175 = vmatprep.subr.mxu0 0.0
    %176 = vmatpush1.msra.mxu0 0.0
    %177 = vmatprep.subr.mxu0 0.0
    %178 = vmatpush1.msra.mxu0 0.0
    %179 = vmatprep.mubr.f32.mxu0 0.0
    %180 = vmatmul.mubr.f32.gmra.mrb[0].mxu0 %v113
    %v181 = vpop.f32.mrb[0].mxu0
    %v182 = vadd.f32 %v109, %v181
    %v183 = vpop.f32.mrb[0].mxu0
    %184 = vdwg.mxu0
    %v185 = vmax.f32 %v182, 0.0
    %v186 = vld [vmem:[#allocation7] sm:$0xff]
    %v187 = vld [vmem:[#allocation7 + $0x8] sm:$0xff]
    %v188 = vld [vmem:[#allocation7 + $0x10] sm:$0xff]
    %v189 = vld [vmem:[#allocation7 + $0x18] sm:$0xff]
    %v190 = vld [vmem:[%s4] sm:$0x1]
    %v192 = vlaneseq
    %v193 = vshrl.u32 %v192, 7
    %v194 = vsub.s32 0, %v193
    %v195 = vrot.slane %v190, %v194
    %v198 = vsel %vm111, %v185, 0
    %200 = vmatprep.subr.mxu0 0.0
    %201 = vmatpush1.msra.mxu0 %v186
    %202 = vmatprep.subr.mxu0 0.0
    %203 = vmatpush1.msra.mxu0 %v187
    %204 = vmatprep.subr.mxu0 0.0
    %205 = vmatpush1.msra.mxu0 %v188
    %206 = vmatprep.subr.mxu0 0.0
    %207 = vmatpush1.msra.mxu0 %v189
    %208 = vmatprep.subr.mxu0 0.0
    %209 = vmatpush1.msra.mxu0 0.0
    %210 = vmatprep.subr.mxu0 0.0
    %211 = vmatpush1.msra.mxu0 0.0
    %212 = vmatprep.subr.mxu0 0.0
    %213 = vmatpush1.msra.mxu0 0.0
    %214 = vmatprep.subr.mxu0 0.0
    %215 = vmatpush1.msra.mxu0 0.0
    %216 = vmatprep.subr.mxu0 0.0
    %217 = vmatpush1.msra.mxu0 0.0
    %218 = vmatprep.subr.mxu0 0.0
    %219 = vmatpush1.msra.mxu0 0.0
    %220 = vmatprep.subr.mxu0 0.0
    %221 = vmatpush1.msra.mxu0 0.0
    %222 = vmatprep.subr.mxu0 0.0
    %223 = vmatpush1.msra.mxu0 0.0
    %224 = vmatprep.subr.mxu0 0.0
    %225 = vmatpush1.msra.mxu0 0.0
    %226 = vmatprep.subr.mxu0 0.0
    %227 = vmatpush1.msra.mxu0 0.0
    %228 = vmatprep.subr.mxu0 0.0
    %229 = vmatpush1.msra.mxu0 0.0
    %230 = vmatprep.subr.mxu0 0.0
    %231 = vmatpush1.msra.mxu0 0.0
    %232 = vmatprep.subr.mxu0 0.0
    %233 = vmatpush1.msra.mxu0 0.0
    %234 = vmatprep.subr.mxu0 0.0
    %235 = vmatpush1.msra.mxu0 0.0
    %236 = vmatprep.subr.mxu0 0.0
    %237 = vmatpush1.msra.mxu0 0.0
    %238 = vmatprep.subr.mxu0 0.0
    %239 = vmatpush1.msra.mxu0 0.0
    %240 = vmatprep.subr.mxu0 0.0
    %241 = vmatpush1.msra.mxu0 0.0
    %242 = vmatprep.subr.mxu0 0.0
    %243 = vmatpush1.msra.mxu0 0.0
    %244 = vmatprep.subr.mxu0 0.0
    %245 = vmatpush1.msra.mxu0 0.0
    %246 = vmatprep.subr.mxu0 0.0
    %247 = vmatpush1.msra.mxu0 0.0
    %248 = vmatprep.subr.mxu0 0.0
    %249 = vmatpush1.msra.mxu0 0.0
    %250 = vmatprep.subr.mxu0 0.0
    %251 = vmatpush1.msra.mxu0 0.0
    %252 = vmatprep.subr.mxu0 0.0
    %253 = vmatpush1.msra.mxu0 0.0
    %254 = vmatprep.subr.mxu0 0.0
    %255 = vmatpush1.msra.mxu0 0.0
    %256 = vmatprep.subr.mxu0 0.0
    %257 = vmatpush1.msra.mxu0 0.0
    %258 = vmatprep.subr.mxu0 0.0
    %259 = vmatpush1.msra.mxu0 0.0
    %260 = vmatprep.subr.mxu0 0.0
    %261 = vmatpush1.msra.mxu0 0.0
    %262 = vmatprep.subr.mxu0 0.0
    %263 = vmatpush1.msra.mxu0 0.0
    %264 = vmatprep.mubr.f32.mxu0 0.0
    %265 = vmatmul.mubr.f32.gmra.mrb[0].mxu0 %v198
    %v266 = vpop.f32.mrb[0].mxu0
    %v267 = vadd.f32 %v195, %v266
    %v268 = vpop.f32.mrb[0].mxu0
    %269 = vdwg.mxu0
    %v270 = vmax.f32 %v267, 0.0
    %v271 = vld [vmem:[#allocation8] sm:$0xff]
    %v272 = vld [vmem:[#allocation8 + $0x8] sm:$0xff]
    %v273 = vld [vmem:[#allocation8 + $0x10] sm:$0xff]
    %v274 = vld [vmem:[#allocation8 + $0x18] sm:$0xff]
    %v275 = vld [vmem:[%s6] sm:$0x1]
    %v277 = vlaneseq
    %v278 = vshrl.u32 %v277, 7
    %v279 = vsub.s32 0, %v278
    %v280 = vrot.slane %v275, %v279
    %v283 = vsel %vm111, %v270, 0
    %285 = vmatprep.subr.mxu0 0.0
    %286 = vmatpush1.msra.mxu0 %v271
    %287 = vmatprep.subr.mxu0 0.0
    %288 = vmatpush1.msra.mxu0 %v272
    %289 = vmatprep.subr.mxu0 0.0
    %290 = vmatpush1.msra.mxu0 %v273
    %291 = vmatprep.subr.mxu0 0.0
    %292 = vmatpush1.msra.mxu0 %v274
    %293 = vmatprep.subr.mxu0 0.0
    %294 = vmatpush1.msra.mxu0 0.0
    %295 = vmatprep.subr.mxu0 0.0
    %296 = vmatpush1.msra.mxu0 0.0
    %297 = vmatprep.subr.mxu0 0.0
    %298 = vmatpush1.msra.mxu0 0.0
    %299 = vmatprep.subr.mxu0 0.0
    %300 = vmatpush1.msra.mxu0 0.0
    %301 = vmatprep.subr.mxu0 0.0
    %302 = vmatpush1.msra.mxu0 0.0
    %303 = vmatprep.subr.mxu0 0.0
    %304 = vmatpush1.msra.mxu0 0.0
    %305 = vmatprep.subr.mxu0 0.0
    %306 = vmatpush1.msra.mxu0 0.0
    %307 = vmatprep.subr.mxu0 0.0
    %308 = vmatpush1.msra.mxu0 0.0
    %309 = vmatprep.subr.mxu0 0.0
    %310 = vmatpush1.msra.mxu0 0.0
    %311 = vmatprep.subr.mxu0 0.0
    %312 = vmatpush1.msra.mxu0 0.0
    %313 = vmatprep.subr.mxu0 0.0
    %314 = vmatpush1.msra.mxu0 0.0
    %315 = vmatprep.subr.mxu0 0.0
    %316 = vmatpush1.msra.mxu0 0.0
    %317 = vmatprep.subr.mxu0 0.0
    %318 = vmatpush1.msra.mxu0 0.0
    %319 = vmatprep.subr.mxu0 0.0
    %320 = vmatpush1.msra.mxu0 0.0
    %321 = vmatprep.subr.mxu0 0.0
    %322 = vmatpush1.msra.mxu0 0.0
    %323 = vmatprep.subr.mxu0 0.0
    %324 = vmatpush1.msra.mxu0 0.0
    %325 = vmatprep.subr.mxu0 0.0
    %326 = vmatpush1.msra.mxu0 0.0
    %327 = vmatprep.subr.mxu0 0.0
    %328 = vmatpush1.msra.mxu0 0.0
    %329 = vmatprep.subr.mxu0 0.0
    %330 = vmatpush1.msra.mxu0 0.0
    %331 = vmatprep.subr.mxu0 0.0
    %332 = vmatpush1.msra.mxu0 0.0
    %333 = vmatprep.subr.mxu0 0.0
    %334 = vmatpush1.msra.mxu0 0.0
    %335 = vmatprep.subr.mxu0 0.0
    %336 = vmatpush1.msra.mxu0 0.0
    %337 = vmatprep.subr.mxu0 0.0
    %338 = vmatpush1.msra.mxu0 0.0
    %339 = vmatprep.subr.mxu0 0.0
    %340 = vmatpush1.msra.mxu0 0.0
    %341 = vmatprep.subr.mxu0 0.0
    %342 = vmatpush1.msra.mxu0 0.0
    %343 = vmatprep.subr.mxu0 0.0
    %344 = vmatpush1.msra.mxu0 0.0
    %345 = vmatprep.subr.mxu0 0.0
    %346 = vmatpush1.msra.mxu0 0.0
    %347 = vmatprep.subr.mxu0 0.0
    %348 = vmatpush1.msra.mxu0 0.0
    %349 = vmatprep.mubr.f32.mxu0 0.0
    %350 = vmatmul.mubr.f32.gmra.mrb[0].mxu0 %v283
    %v351 = vpop.f32.mrb[0].mxu0
    %v352 = vadd.f32 %v280, %v351
    %v353 = vpop.f32.mrb[0].mxu0
    %354 = vdwg.mxu0
    %v355 = vld [vmem:[#allocation10] sm:$0xff]
    %v356 = vld [vmem:[#allocation10 + $0x8] sm:$0xff]
    %v357 = vld [vmem:[#allocation10 + $0x10] sm:$0xff]
    %v358 = vld [vmem:[#allocation10 + $0x18] sm:$0xff]
    %v359 = vld [vmem:[%s8] sm:$0x1]
    %v361 = vlaneseq
    %v362 = vshrl.u32 %v361, 7
    %v363 = vsub.s32 0, %v362
    %v364 = vrot.slane %v359, %v363
    %v367 = vsel %vm111, %v352, 0
    %369 = vmatprep.subr.mxu0 0.0
    %370 = vmatpush1.msra.mxu0 %v355
    %371 = vmatprep.subr.mxu0 0.0
    %372 = vmatpush1.msra.mxu0 %v356
    %373 = vmatprep.subr.mxu0 0.0
    %374 = vmatpush1.msra.mxu0 %v357
    %375 = vmatprep.subr.mxu0 0.0
    %376 = vmatpush1.msra.mxu0 %v358
    %377 = vmatprep.subr.mxu0 0.0
    %378 = vmatpush1.msra.mxu0 0.0
    %379 = vmatprep.subr.mxu0 0.0
    %380 = vmatpush1.msra.mxu0 0.0
    %381 = vmatprep.subr.mxu0 0.0
    %382 = vmatpush1.msra.mxu0 0.0
    %383 = vmatprep.subr.mxu0 0.0
    %384 = vmatpush1.msra.mxu0 0.0
    %385 = vmatprep.subr.mxu0 0.0
    %386 = vmatpush1.msra.mxu0 0.0
    %387 = vmatprep.subr.mxu0 0.0
    %388 = vmatpush1.msra.mxu0 0.0
    %389 = vmatprep.subr.mxu0 0.0
    %390 = vmatpush1.msra.mxu0 0.0
    %391 = vmatprep.subr.mxu0 0.0
    %392 = vmatpush1.msra.mxu0 0.0
    %393 = vmatprep.subr.mxu0 0.0
    %394 = vmatpush1.msra.mxu0 0.0
    %395 = vmatprep.subr.mxu0 0.0
    %396 = vmatpush1.msra.mxu0 0.0
    %397 = vmatprep.subr.mxu0 0.0
    %398 = vmatpush1.msra.mxu0 0.0
    %399 = vmatprep.subr.mxu0 0.0
    %400 = vmatpush1.msra.mxu0 0.0
    %401 = vmatprep.subr.mxu0 0.0
    %402 = vmatpush1.msra.mxu0 0.0
    %403 = vmatprep.subr.mxu0 0.0
    %404 = vmatpush1.msra.mxu0 0.0
    %405 = vmatprep.subr.mxu0 0.0
    %406 = vmatpush1.msra.mxu0 0.0
    %407 = vmatprep.subr.mxu0 0.0
    %408 = vmatpush1.msra.mxu0 0.0
    %409 = vmatprep.subr.mxu0 0.0
    %410 = vmatpush1.msra.mxu0 0.0
    %411 = vmatprep.subr.mxu0 0.0
    %412 = vmatpush1.msra.mxu0 0.0
    %413 = vmatprep.subr.mxu0 0.0
    %414 = vmatpush1.msra.mxu0 0.0
    %415 = vmatprep.subr.mxu0 0.0
    %416 = vmatpush1.msra.mxu0 0.0
    %417 = vmatprep.subr.mxu0 0.0
    %418 = vmatpush1.msra.mxu0 0.0
    %419 = vmatprep.subr.mxu0 0.0
    %420 = vmatpush1.msra.mxu0 0.0
    %421 = vmatprep.subr.mxu0 0.0
    %422 = vmatpush1.msra.mxu0 0.0
    %423 = vmatprep.subr.mxu0 0.0
    %424 = vmatpush1.msra.mxu0 0.0
    %425 = vmatprep.subr.mxu0 0.0
    %426 = vmatpush1.msra.mxu0 0.0
    %427 = vmatprep.subr.mxu0 0.0
    %428 = vmatpush1.msra.mxu0 0.0
    %429 = vmatprep.subr.mxu0 0.0
    %430 = vmatpush1.msra.mxu0 0.0
    %431 = vmatprep.subr.mxu0 0.0
    %432 = vmatpush1.msra.mxu0 0.0
    %433 = vmatprep.mubr.f32.mxu0 0.0
    %434 = vmatmul.mubr.f32.gmra.mrb[0].mxu0 %v367
    %v435 = vpop.f32.mrb[0].mxu0
    %v436 = vadd.f32 %v364, %v435
    %v437 = vpop.f32.mrb[0].mxu0
    %438 = vdwg.mxu0
    %v439 = vlaneseq
    %v440 = vand.u32 %v439, 127
    %vm441 = vcmp.lt.s32.totalorder %v440, 24
    %v442 = vtanh.pop %v436
    %v443 = vsel %vm441, %v442, %v436
    %444 = vst [vmem:[#allocation11] sm:$0xff] %v443
    // Predicated region
    $region58: #{tpu_custom_call.1} parent=1 // pred_check
      _
    $region59: #{tpu_custom_call.1} parent=1 // pred_check_branch
      %446 = sbr.rel (0) target = $region61
    $region60: #{tpu_custom_call.1} parent=1 // pred_region
      %s448 = ssub.s32 128, 128
      %449 = vsyncadd [#allocation4], %s448
      %s451 = sshll.u32 [#allocation11], 4
      %s452 = int_to_ptr.vmem [resolvable:$true] %s451
      %454 = dma.vmem_to_hbm [thread:$0]  %s452, 128, %s9, [#allocation4]
    $region61: #{tpu_custom_call.1} parent=1 // pred_fallthru
      _
    // Predicated region
    $region62: #{tpu_custom_call.1} parent=1 // pred_check
      _
    $region63: #{tpu_custom_call.1} parent=1 // pred_check_branch
      %456 = sbr.rel (0) target = $region65
    $region64: #{tpu_custom_call.1} parent=1 // pred_region
      %457 = dma.done [#allocation4], 128
    $region65: #{tpu_custom_call.1} parent=1 // pred_fallthru
      _
    %458 = vsyncpa [#allocation3], 1
    %459 = vsyncpa [#allocation6], 1
    %460 = vsyncpa [#allocation9], 1
    %461 = vsyncpa [#allocation4], 1

</llo_original>
